<compile_context>
chip_gen: v7x
topology: tpu7x:2x2x1
jax: 0.10.0
libtpu: 0.0.40
codegen_flags: <defaults>
</compile_context>

<pallas_src>
import jax
import jax.numpy as jnp
from jax import lax
from jax.experimental import pallas as pl
from jax.experimental.pallas import tpu as pltpu


def pointer_kernel(cand_ref, inter_ref, mask_ref,
                   wd_ref, bd_ref, we_ref, be_ref, wsel_ref, br_ref,
                   logits_ref, comp_ref):
    # cand_ref : (bb, T, H)    inter_ref : (bb, P, H)   mask_ref : (bb, 1, T)
    # wd/we    : (H, H) (PyTorch Linear weight, untransposed)
    # bd/be    : (1, H)        wsel : (T*H, T)          br : (1, 1)
    # logits_ref : (bb, P, T)  comp_ref : (bb, P, T*H)  (lane-dense)
    bb, T, H = cand_ref.shape
    wd = wd_ref[...]
    we = we_ref[...]
    bd = bd_ref[...]
    be = be_ref[...]
    wsel = wsel_ref[...]                               # (T*H, T)
    neg = jnp.float32(-1000000000.0)

    # x @ W^T without materializing W^T (contract last dims on both sides).
    contract_last = (((1,), (1,)), ((), ()))

    for i in range(bb):                                # bb is a small static constant
        cand = cand_ref[i]                             # (T, H)
        inter = inter_ref[i]                           # (P, H)

        # decoder_query = inter_output @ Wd^T + bd     -> (P, H)
        dq = lax.dot_general(inter, wd, contract_last,
                             preferred_element_type=jnp.float32) + bd
        # token_embeddings = candidate @ We^T + be     -> (T, H)
        te = lax.dot_general(cand, we, contract_last,
                             preferred_element_type=jnp.float32) + be

        # comparison built directly in lane-dense (P, T*H) layout:
        # comp_flat[p, t*H + h] = tanh(dq[p, h] + te[t, h])
        pieces = [jnp.tanh(dq + te[t:t + 1, :]) for t in range(T)]   # T x (P, H)
        comp_flat = jnp.concatenate(pieces, axis=-1)                 # (P, T*H)
        comp_ref[i] = comp_flat.astype(comp_ref.dtype)

        # reference(comparison) -> (P, T) via one MXU matmul with the selector.
        logits = jnp.dot(comp_flat, wsel,
                         preferred_element_type=jnp.float32) + br_ref[...]
        # masked_fill(candidate_mask, -1e9); mask_ref[i] is (1, T), broadcasts over P.
        logits = jnp.where(mask_ref[i] > 0, neg, logits)
        logits_ref[i] = logits.astype(logits_ref.dtype)


def pointer_network(candidate, inter_output, candidate_mask, params, *,
                    batch_block=None):
    B, T, H = candidate.shape
    P = inter_output.shape[1]

    if batch_block is None:
        # At most two grid steps: fills both v7x TensorCores, while keeping
        # per-step pipeline overhead (~0.35us) negligible on v5e/v6e.
        batch_block = min(max(1, B // 2), 8)
        while B % batch_block:
            batch_block -= 1
    bb = batch_block
    nb = B // bb

    wd = params["wd"]                                  # (H, H), untransposed
    we = params["we"]                                  # (H, H), untransposed
    bd = params["bd"].reshape(1, H)
    be = params["be"].reshape(1, H)
    br = params["br"].reshape(1, 1)
    # (T*H, T) selector: logits = comp_flat @ wsel  (runs on the MXU).
    wsel = jnp.kron(jnp.eye(T, dtype=jnp.float32), params["wr"].reshape(H, 1))
    mask_i32 = candidate_mask.astype(jnp.int32).reshape(B, 1, T)

    grid_spec = pltpu.PrefetchScalarGridSpec(
        num_scalar_prefetch=0,
        grid=(nb,),
        in_specs=[
            pl.BlockSpec((bb, T, H), lambda b: (b, 0, 0)),      # candidate
            pl.BlockSpec((bb, P, H), lambda b: (b, 0, 0)),      # inter_output
            pl.BlockSpec((bb, 1, T), lambda b: (b, 0, 0)),      # mask
            pl.BlockSpec((H, H),     lambda b: (0, 0)),         # Wd
            pl.BlockSpec((1, H),     lambda b: (0, 0)),         # bd
            pl.BlockSpec((H, H),     lambda b: (0, 0)),         # We
            pl.BlockSpec((1, H),     lambda b: (0, 0)),         # be
            pl.BlockSpec((T * H, T), lambda b: (0, 0)),         # wsel
            pl.BlockSpec((1, 1),     lambda b: (0, 0)),         # br
        ],
        out_specs=[
            pl.BlockSpec((bb, P, T),     lambda b: (b, 0, 0)),  # logits
            pl.BlockSpec((bb, P, T * H), lambda b: (b, 0, 0)),  # comparison (flat)
        ],
    )

    logits, comp_flat = pl.pallas_call(
        pointer_kernel,
        out_shape=(
            jax.ShapeDtypeStruct((B, P, T), jnp.float32),
            jax.ShapeDtypeStruct((B, P, T * H), jnp.float32),
        ),
        grid_spec=grid_spec,
        compiler_params=pltpu.CompilerParams(
            dimension_semantics=("parallel",)),
    )(candidate, inter_output, mask_i32, wd, bd, we, be, wsel, br)

    comparison = comp_flat.reshape(B, P, T, H)
    return logits, comparison


def pointer_network_ref(candidate, inter_output, candidate_mask, params):
    """Pure-JAX reference mirroring the PyTorch forward."""
    B, T, H = candidate.shape
    P = inter_output.shape[1]
    dq = inter_output @ params["wd"].T + params["bd"]       # (B, P, H)
    te = candidate @ params["we"].T + params["be"]          # (B, T, H)
    comp = jnp.tanh(dq[:, :, None, :] + te[:, None, :, :])  # (B, P, T, H)
    logits = (comp @ params["wr"].reshape(H, 1)).reshape(B, P, T) + params["br"][0]
    mask = candidate_mask[:, None, :]                       # (B, 1, T)
    logits = jnp.where(mask, jnp.float32(-1000000000.0), logits)
    return logits, comp


if __name__ == "__main__":
    key = jax.random.PRNGKey(0)
    B, T, P, H = 2, 8, 8, 32      # batch, n_token, num_pos, hidden_size
    ks = jax.random.split(key, 9)

    candidate = jax.random.normal(ks[0], (B, T, H), jnp.float32)
    inter_output = jax.random.normal(ks[1], (B, P, H), jnp.float32)
    candidate_mask = jax.random.bernoulli(ks[2], 0.3, (B, T))

    scale = 1.0 / (H ** 0.5)
    params = {
        "wd": jax.random.uniform(ks[3], (H, H), jnp.float32, -scale, scale),
        "bd": jax.random.uniform(ks[4], (H,),   jnp.float32, -scale, scale),
        "we": jax.random.uniform(ks[5], (H, H), jnp.float32, -scale, scale),
        "be": jax.random.uniform(ks[6], (H,),   jnp.float32, -scale, scale),
        "wr": jax.random.uniform(ks[7], (1, H), jnp.float32, -scale, scale),
        "br": jax.random.uniform(ks[8], (1,),   jnp.float32, -scale, scale),
    }

    logits, comparison = pointer_network(candidate, inter_output,
                                         candidate_mask, params)
    jax.block_until_ready((logits, comparison))

    ref_logits, ref_comp = pointer_network_ref(candidate, inter_output,
                                               candidate_mask, params)
    assert logits.shape == (B, P, T) and comparison.shape == (B, P, T, H)
    assert jnp.allclose(logits, ref_logits, atol=1e-4, rtol=1e-4)
    assert jnp.allclose(comparison, ref_comp, atol=1e-4, rtol=1e-4)

    print("KERNEL_OK")
</pallas_src>

<mosaic_0001>
module attributes {stable_mosaic.version = 11 : i64} {
  func.func @pointer_kernel(%arg0: i32, %arg1: memref<1x8x32xf32, #tpu.memory_space<vmem>>, %arg2: memref<1x8x32xf32, #tpu.memory_space<vmem>>, %arg3: memref<1x1x8xi32, #tpu.memory_space<vmem>>, %arg4: memref<32x32xf32, #tpu.memory_space<vmem>>, %arg5: memref<1x32xf32, #tpu.memory_space<vmem>>, %arg6: memref<32x32xf32, #tpu.memory_space<vmem>>, %arg7: memref<1x32xf32, #tpu.memory_space<vmem>>, %arg8: memref<256x8xf32, #tpu.memory_space<vmem>>, %arg9: memref<1x1xf32, #tpu.memory_space<vmem>>, %arg10: memref<1x8x8xf32, #tpu.memory_space<vmem>>, %arg11: memref<1x8x256xf32, #tpu.memory_space<vmem>>) attributes {dimension_semantics = [#tpu.dimension_semantics<parallel>], iteration_bounds = array<i64: 2>, scalar_prefetch = 0 : i64, scratch_operands = 0 : i64, tpu.core_type = #tpu.core_type<tc>, window_params = [{transform_indices = @transform_0, window_bounds = array<i64: 1, 8, 32>}, {transform_indices = @transform_1, window_bounds = array<i64: 1, 8, 32>}, {transform_indices = @transform_2, window_bounds = array<i64: 1, 1, 8>}, {pipeline_mode = #tpu.pipeline_mode<synchronous>, transform_indices = @transform_3, window_bounds = array<i64: 32, 32>}, {pipeline_mode = #tpu.pipeline_mode<synchronous>, transform_indices = @transform_4, window_bounds = array<i64: 1, 32>}, {pipeline_mode = #tpu.pipeline_mode<synchronous>, transform_indices = @transform_5, window_bounds = array<i64: 32, 32>}, {pipeline_mode = #tpu.pipeline_mode<synchronous>, transform_indices = @transform_6, window_bounds = array<i64: 1, 32>}, {pipeline_mode = #tpu.pipeline_mode<synchronous>, transform_indices = @transform_7, window_bounds = array<i64: 256, 8>}, {pipeline_mode = #tpu.pipeline_mode<synchronous>, transform_indices = @transform_8, window_bounds = array<i64: 1, 1>}, {transform_indices = @transform_9, window_bounds = array<i64: 1, 8, 8>}, {transform_indices = @transform_10, window_bounds = array<i64: 1, 8, 256>}]} {
    %c0 = arith.constant 0 : index
    %c0_0 = arith.constant 0 : index
    %0 = vector.load %arg4[%c0, %c0_0] : memref<32x32xf32, #tpu.memory_space<vmem>>, vector<32x32xf32>
    %c0_1 = arith.constant 0 : index
    %c0_2 = arith.constant 0 : index
    %1 = vector.load %arg6[%c0_1, %c0_2] : memref<32x32xf32, #tpu.memory_space<vmem>>, vector<32x32xf32>
    %c0_3 = arith.constant 0 : index
    %c0_4 = arith.constant 0 : index
    %2 = vector.load %arg5[%c0_3, %c0_4] : memref<1x32xf32, #tpu.memory_space<vmem>>, vector<1x32xf32>
    %c0_5 = arith.constant 0 : index
    %c0_6 = arith.constant 0 : index
    %3 = vector.load %arg7[%c0_5, %c0_6] : memref<1x32xf32, #tpu.memory_space<vmem>>, vector<1x32xf32>
    %c0_7 = arith.constant 0 : index
    %c0_8 = arith.constant 0 : index
    %4 = vector.load %arg8[%c0_7, %c0_8] : memref<256x8xf32, #tpu.memory_space<vmem>>, vector<256x8xf32>
    %c0_9 = arith.constant 0 : index
    %c0_10 = arith.constant 0 : index
    %c0_11 = arith.constant 0 : index
    %5 = vector.load %arg1[%c0_9, %c0_10, %c0_11] : memref<1x8x32xf32, #tpu.memory_space<vmem>>, vector<1x8x32xf32>
    %6 = vector.shape_cast %5 : vector<1x8x32xf32> to vector<8x32xf32>
    %c0_12 = arith.constant 0 : index
    %c0_13 = arith.constant 0 : index
    %c0_14 = arith.constant 0 : index
    %7 = vector.load %arg2[%c0_12, %c0_13, %c0_14] : memref<1x8x32xf32, #tpu.memory_space<vmem>>, vector<1x8x32xf32>
    %8 = vector.shape_cast %7 : vector<1x8x32xf32> to vector<8x32xf32>
    %cst = arith.constant dense<0.000000e+00> : vector<8x32xf32>
    %9 = tpu.matmul %8, %0, %cst {dimension_numbers = #tpu.dot_dimension_numbers<[1], [1], [0], [0], [0, 0, 1, 0], [], []>} : vector<8x32xf32>, vector<32x32xf32>, vector<8x32xf32> -> vector<8x32xf32>
    %10 = vector.broadcast %2 : vector<1x32xf32> to vector<8x32xf32>
    %11 = arith.addf %9, %10 : vector<8x32xf32>
    %cst_15 = arith.constant dense<0.000000e+00> : vector<8x32xf32>
    %12 = tpu.matmul %6, %1, %cst_15 {dimension_numbers = #tpu.dot_dimension_numbers<[1], [1], [0], [0], [0, 0, 1, 0], [], []>} : vector<8x32xf32>, vector<32x32xf32>, vector<8x32xf32> -> vector<8x32xf32>
    %13 = vector.broadcast %3 : vector<1x32xf32> to vector<8x32xf32>
    %14 = arith.addf %12, %13 : vector<8x32xf32>
    %15 = vector.extract_strided_slice %14 {offsets = [0, 0], sizes = [1, 32], strides = [1, 1]} : vector<8x32xf32> to vector<1x32xf32>
    %16 = vector.broadcast %15 : vector<1x32xf32> to vector<8x32xf32>
    %17 = arith.addf %11, %16 : vector<8x32xf32>
    %18 = math.tanh %17 : vector<8x32xf32>
    %19 = vector.extract_strided_slice %14 {offsets = [1, 0], sizes = [1, 32], strides = [1, 1]} : vector<8x32xf32> to vector<1x32xf32>
    %20 = vector.broadcast %19 : vector<1x32xf32> to vector<8x32xf32>
    %21 = arith.addf %11, %20 : vector<8x32xf32>
    %22 = math.tanh %21 : vector<8x32xf32>
    %23 = vector.extract_strided_slice %14 {offsets = [2, 0], sizes = [1, 32], strides = [1, 1]} : vector<8x32xf32> to vector<1x32xf32>
    %24 = vector.broadcast %23 : vector<1x32xf32> to vector<8x32xf32>
    %25 = arith.addf %11, %24 : vector<8x32xf32>
    %26 = math.tanh %25 : vector<8x32xf32>
    %27 = vector.extract_strided_slice %14 {offsets = [3, 0], sizes = [1, 32], strides = [1, 1]} : vector<8x32xf32> to vector<1x32xf32>
    %28 = vector.broadcast %27 : vector<1x32xf32> to vector<8x32xf32>
    %29 = arith.addf %11, %28 : vector<8x32xf32>
    %30 = math.tanh %29 : vector<8x32xf32>
    %31 = vector.extract_strided_slice %14 {offsets = [4, 0], sizes = [1, 32], strides = [1, 1]} : vector<8x32xf32> to vector<1x32xf32>
    %32 = vector.broadcast %31 : vector<1x32xf32> to vector<8x32xf32>
    %33 = arith.addf %11, %32 : vector<8x32xf32>
    %34 = math.tanh %33 : vector<8x32xf32>
    %35 = vector.extract_strided_slice %14 {offsets = [5, 0], sizes = [1, 32], strides = [1, 1]} : vector<8x32xf32> to vector<1x32xf32>
    %36 = vector.broadcast %35 : vector<1x32xf32> to vector<8x32xf32>
    %37 = arith.addf %11, %36 : vector<8x32xf32>
    %38 = math.tanh %37 : vector<8x32xf32>
    %39 = vector.extract_strided_slice %14 {offsets = [6, 0], sizes = [1, 32], strides = [1, 1]} : vector<8x32xf32> to vector<1x32xf32>
    %40 = vector.broadcast %39 : vector<1x32xf32> to vector<8x32xf32>
    %41 = arith.addf %11, %40 : vector<8x32xf32>
    %42 = math.tanh %41 : vector<8x32xf32>
    %43 = vector.extract_strided_slice %14 {offsets = [7, 0], sizes = [1, 32], strides = [1, 1]} : vector<8x32xf32> to vector<1x32xf32>
    %44 = vector.broadcast %43 : vector<1x32xf32> to vector<8x32xf32>
    %45 = arith.addf %11, %44 : vector<8x32xf32>
    %46 = math.tanh %45 : vector<8x32xf32>
    %47 = tpu.concatenate %18, %22, %26, %30, %34, %38, %42, %46 in 1 : vector<8x32xf32>, vector<8x32xf32>, vector<8x32xf32>, vector<8x32xf32>, vector<8x32xf32>, vector<8x32xf32>, vector<8x32xf32>, vector<8x32xf32> -> vector<8x256xf32>
    %c0_16 = arith.constant 0 : index
    %c0_17 = arith.constant 0 : index
    %c0_18 = arith.constant 0 : index
    %48 = vector.load %arg11[%c0_16, %c0_17, %c0_18] : memref<1x8x256xf32, #tpu.memory_space<vmem>>, vector<1x8x256xf32>
    %49 = vector.shape_cast %48 : vector<1x8x256xf32> to vector<8x256xf32>
    %50 = vector.shape_cast %47 : vector<8x256xf32> to vector<1x8x256xf32>
    tpu.vector_store %arg11[%c0_16, %c0_17, %c0_18], %50 {strides = array<i32>} : memref<1x8x256xf32, #tpu.memory_space<vmem>>, vector<1x8x256xf32>,
    %cst_19 = arith.constant dense<0.000000e+00> : vector<8x8xf32>
    %51 = tpu.matmul %47, %4, %cst_19 {dimension_numbers = #tpu.dot_dimension_numbers<[1], [0], [0], [1], [0, 0, 1, 1], [], []>} : vector<8x256xf32>, vector<256x8xf32>, vector<8x8xf32> -> vector<8x8xf32>
    %c0_20 = arith.constant 0 : index
    %c0_21 = arith.constant 0 : index
    %52 = vector.load %arg9[%c0_20, %c0_21] : memref<1x1xf32, #tpu.memory_space<vmem>>, vector<1x1xf32>
    %53 = vector.broadcast %52 : vector<1x1xf32> to vector<8x8xf32>
    %54 = arith.addf %51, %53 : vector<8x8xf32>
    %c0_22 = arith.constant 0 : index
    %c0_23 = arith.constant 0 : index
    %c0_24 = arith.constant 0 : index
    %55 = vector.load %arg3[%c0_22, %c0_23, %c0_24] : memref<1x1x8xi32, #tpu.memory_space<vmem>>, vector<1x1x8xi32>
    %56 = vector.shape_cast %55 : vector<1x1x8xi32> to vector<1x8xi32>
    %c0_i32 = arith.constant 0 : i32
    %57 = vector.broadcast %c0_i32 : i32 to vector<1x8xi32>
    %58 = arith.cmpi sgt, %56, %57 : vector<1x8xi32>
    %cst_25 = arith.constant -1.000000e+09 : f32
    %59 = vector.shape_cast %58 : vector<1x8xi1> to vector<1x8xi1>
    %60 = vector.broadcast %59 : vector<1x8xi1> to vector<8x8xi1>
    %61 = vector.broadcast %cst_25 : f32 to vector<8x8xf32>
    %62 = arith.select %60, %61, %54 : vector<8x8xi1>, vector<8x8xf32>
    %c0_26 = arith.constant 0 : index
    %c0_27 = arith.constant 0 : index
    %c0_28 = arith.constant 0 : index
    %63 = vector.load %arg10[%c0_26, %c0_27, %c0_28] : memref<1x8x8xf32, #tpu.memory_space<vmem>>, vector<1x8x8xf32>
    %64 = vector.shape_cast %63 : vector<1x8x8xf32> to vector<8x8xf32>
    %65 = vector.shape_cast %62 : vector<8x8xf32> to vector<1x8x8xf32>
    tpu.vector_store %arg10[%c0_26, %c0_27, %c0_28], %65 {strides = array<i32>} : memref<1x8x8xf32, #tpu.memory_space<vmem>>, vector<1x8x8xf32>,
    return
  }
  func.func @transform_0(%arg0: i32) -> (i32, i32, i32) {
    %c0_i32 = arith.constant 0 : i32
    %c0_i32_0 = arith.constant 0 : i32
    %c0_i32_1 = arith.constant 0 : i32
    return %arg0, %c0_i32, %c0_i32_0 : i32, i32, i32
  }
  func.func @transform_1(%arg0: i32) -> (i32, i32, i32) {
    %c0_i32 = arith.constant 0 : i32
    %c0_i32_0 = arith.constant 0 : i32
    %c0_i32_1 = arith.constant 0 : i32
    return %arg0, %c0_i32, %c0_i32_0 : i32, i32, i32
  }
  func.func @transform_2(%arg0: i32) -> (i32, i32, i32) {
    %c0_i32 = arith.constant 0 : i32
    %c0_i32_0 = arith.constant 0 : i32
    %c0_i32_1 = arith.constant 0 : i32
    return %arg0, %c0_i32, %c0_i32_0 : i32, i32, i32
  }
  func.func @transform_3(%arg0: i32) -> (i32, i32) {
    %c0_i32 = arith.constant 0 : i32
    %c0_i32_0 = arith.constant 0 : i32
    %c0_i32_1 = arith.constant 0 : i32
    return %c0_i32, %c0_i32_0 : i32, i32
  }
  func.func @transform_4(%arg0: i32) -> (i32, i32) {
    %c0_i32 = arith.constant 0 : i32
    %c0_i32_0 = arith.constant 0 : i32
    %c0_i32_1 = arith.constant 0 : i32
    return %c0_i32, %c0_i32_0 : i32, i32
  }
  func.func @transform_5(%arg0: i32) -> (i32, i32) {
    %c0_i32 = arith.constant 0 : i32
    %c0_i32_0 = arith.constant 0 : i32
    %c0_i32_1 = arith.constant 0 : i32
    return %c0_i32, %c0_i32_0 : i32, i32
  }
  func.func @transform_6(%arg0: i32) -> (i32, i32) {
    %c0_i32 = arith.constant 0 : i32
    %c0_i32_0 = arith.constant 0 : i32
    %c0_i32_1 = arith.constant 0 : i32
    return %c0_i32, %c0_i32_0 : i32, i32
  }
  func.func @transform_7(%arg0: i32) -> (i32, i32) {
    %c0_i32 = arith.constant 0 : i32
    %c0_i32_0 = arith.constant 0 : i32
    %c0_i32_1 = arith.constant 0 : i32
    return %c0_i32, %c0_i32_0 : i32, i32
  }
  func.func @transform_8(%arg0: i32) -> (i32, i32) {
    %c0_i32 = arith.constant 0 : i32
    %c0_i32_0 = arith.constant 0 : i32
    %c0_i32_1 = arith.constant 0 : i32
    return %c0_i32, %c0_i32_0 : i32, i32
  }
  func.func @transform_9(%arg0: i32) -> (i32, i32, i32) {
    %c0_i32 = arith.constant 0 : i32
    %c0_i32_0 = arith.constant 0 : i32
    %c0_i32_1 = arith.constant 0 : i32
    return %arg0, %c0_i32, %c0_i32_0 : i32, i32, i32
  }
  func.func @transform_10(%arg0: i32) -> (i32, i32, i32) {
    %c0_i32 = arith.constant 0 : i32
    %c0_i32_0 = arith.constant 0 : i32
    %c0_i32_1 = arith.constant 0 : i32
    return %arg0, %c0_i32, %c0_i32_0 : i32, i32, i32
  }
}

</mosaic_0001>

<llo_original>
// kernel: tpu_custom_call.1
$region0: #{tpu_custom_call.1}
  #allocation0 [shape = 'u32[]', space=smem, size = 0x4, offset = 0x4, fixed_abs, tag = 'smem constant byte address 0x4 - core index']
  #allocation1 [shape = 'u32[144,128]{1,0:T(1,128)}', space=vmem, size = 0x12000, scoped, tag = 'internal scratch']
  #allocation2 [shape = 'f32[1,1]{1,0:T(1,128)S(1)}', space=vmem, size = 0x200, scoped, tag = 'scoped memory for tpu_custom_call.1']
  %s0 = inlined_call_operand.vmem [shape: f32[2,8,32], index: 0, kind: input, shape index: {}]
  %s1 = inlined_call_operand.vmem [shape: f32[2,8,32], index: 1, kind: input, shape index: {}]
  %s2 = inlined_call_operand.vmem [shape: s32[2,1,8], index: 2, kind: input, shape index: {}]
  %s3 = inlined_call_operand.vmem [shape: f32[32,32], index: 3, kind: input, shape index: {}]
  %s4 = inlined_call_operand.vmem [shape: f32[1,32], index: 4, kind: input, shape index: {}]
  %s5 = inlined_call_operand.vmem [shape: f32[32,32], index: 5, kind: input, shape index: {}]
  %s6 = inlined_call_operand.vmem [shape: f32[1,32], index: 6, kind: input, shape index: {}]
  %s7 = inlined_call_operand.vmem [shape: f32[256,8], index: 7, kind: input, shape index: {}]
  %s8 = inlined_call_operand.<no memory space> [shape: f32[1,1], index: 8, kind: input, shape index: {}]
  %s9 = inlined_call_operand.hbm [shape: f32[2,8,8], index: 9, kind: output, shape index: {0}]
  %s10 = inlined_call_operand.hbm [shape: f32[2,8,256], index: 10, kind: output, shape index: {1}]
  %11 = xla_tuple %s9, %s10
  %s12 = sld [smem:[#allocation0]]
  $region77: #{tpu_custom_call.1} parent=0
    _
  %s14 = ssub.s32 1, %s12
  %s15 = scalar_select 0, %s14, %s12
  %v16 = vstv %s8
  %17 = vst [vmem:[#allocation2] sm:$0x1] %v16
  $region1: #{tpu_custom_call.1} parent=0
    #allocation3 [shape = 'u8[8192]{0}', space=vmem, size = 0x2000, scoped, tag = 'output window, operand 0']
    #allocation4 [shape = 's32[2]{0}', space=sflag, size = 0x8, scoped, tag = 'scoped memory for tpu_custom_call.1']
    #allocation5 [shape = 'u8[16384]{0}', space=vmem, size = 0x4000, scoped, tag = 'output window, operand 1']
    #allocation6 [shape = 's32[2]{0}', space=sflag, size = 0x8, scoped, tag = 'scoped memory for tpu_custom_call.1']
    %18 = vsyncpa [#allocation4], 0
    %s19 = scalar_lea.sflag [#allocation4], 1
    %20 = vsyncpa %s19, 0
    %21 = vsyncpa [#allocation6], 0
    %s22 = scalar_lea.sflag [#allocation6], 1
    %23 = vsyncpa %s22, 0
    loop: start=0, step=1, limit=4
    $region2: #{tpu_custom_call.1} parent=1 // loop_pre_header
      _
    $region3: #{tpu_custom_call.1} parent=1 // loop_header
      %s25 = sphi 0, %s29
      %p26 = scmp.ge.s32.totalorder %s25, 4
      %s35 = sphi 0, %s37
      %s38 = sphi 0, %s35
      %s39 = sphi 0, %s38
      %s55 = sphi 0, %s39
      %s61 = sphi 0, %s63
      %s64 = sphi 0, %s61
      %s65 = sphi 0, %s64
      %s81 = sphi 0, %s65
      %s87 = sphi 0, %s89
      %s90 = sphi 0, %s87
      %s91 = sphi 0, %s90
      %s107 = sphi 0, %s91
      %s111 = sphi 0, %s111
      %s113 = sphi 0, %s111
      %s114 = sphi 0, %s113
      %s128 = sphi 0, %s114
      %s132 = sphi 0, %s132
      %s134 = sphi 0, %s132
      %s135 = sphi 0, %s134
      %s149 = sphi 0, %s135
      %s153 = sphi 0, %s153
      %s155 = sphi 0, %s153
      %s156 = sphi 0, %s155
      %s170 = sphi 0, %s156
      %s174 = sphi 0, %s174
      %s176 = sphi 0, %s174
      %s177 = sphi 0, %s176
      %s191 = sphi 0, %s177
      %s195 = sphi 0, %s195
      %s197 = sphi 0, %s195
      %s198 = sphi 0, %s197
      %s212 = sphi 0, %s198
      %s216 = sphi 0, %s216
      %s218 = sphi 0, %s216
      %s219 = sphi 0, %s218
      %s233 = sphi 0, %s219
      %s239 = sphi 0, %s241
      %s242 = sphi 0, %s239
      %s243 = sphi 0, %s242
      %s259 = sphi 0, %s243
      %s265 = sphi 0, %s267
      %s268 = sphi 0, %s265
      %s269 = sphi 0, %s268
      %s285 = sphi 0, %s269
    $region4: #{tpu_custom_call.1} parent=1 // loop_header_branch
      %28 = sbr.rel (%p26) target = $region8
    $region5: #{tpu_custom_call.1} parent=1 // loop_body
      %s30 = ssub.s32 %s25, 1
      %s31 = ssub.s32 %s25, 2
      %s32 = sadd.s32 %s25, 1
      %s33 = ssub.s32 %s25, %s32
      %p34 = scmp.eq.s32.totalorder %s33, 0
      %s36 = sadd.s32 %s35, 1
      %s37 = scalar_select %p34, %s35, %s36
      %p40 = pneg %p34
      %p41 = scmp.eq.s32.totalorder %s25, 1
      %p42 = por %p40, %p41
      %p43 = scmp.ne.s32.totalorder %s35, %s38
      %p44 = scmp.eq.s32.totalorder %s25, 0
      %p45 = por %p43, %p44
      %p46 = scmp.ne.s32.totalorder %s35, %s38
      %p47 = scmp.eq.s32.totalorder %s30, 1
      %p48 = por %p46, %p47
      %p49 = scmp.ne.s32.totalorder %s38, %s39
      %p50 = scmp.eq.s32.totalorder %s30, 0
      %p51 = por %p49, %p50
      %p52 = scmp.ne.s32.totalorder %s38, %s39
      %p53 = scmp.eq.s32.totalorder %s31, 1
      %p54 = por %p52, %p53
      %p56 = scmp.ne.s32.totalorder %s39, %s55
      %p57 = scmp.eq.s32.totalorder %s31, 0
      %p58 = por %p56, %p57
      %s59 = ssub.s32 %s25, %s32
      %p60 = scmp.eq.s32.totalorder %s59, 0
      %s62 = sadd.s32 %s61, 1
      %s63 = scalar_select %p60, %s61, %s62
      %p66 = pneg %p60
      %p67 = scmp.eq.s32.totalorder %s25, 1
      %p68 = por %p66, %p67
      %p69 = scmp.ne.s32.totalorder %s61, %s64
      %p70 = scmp.eq.s32.totalorder %s25, 0
      %p71 = por %p69, %p70
      %p72 = scmp.ne.s32.totalorder %s61, %s64
      %p73 = scmp.eq.s32.totalorder %s30, 1
      %p74 = por %p72, %p73
      %p75 = scmp.ne.s32.totalorder %s64, %s65
      %p76 = scmp.eq.s32.totalorder %s30, 0
      %p77 = por %p75, %p76
      %p78 = scmp.ne.s32.totalorder %s64, %s65
      %p79 = scmp.eq.s32.totalorder %s31, 1
      %p80 = por %p78, %p79
      %p82 = scmp.ne.s32.totalorder %s65, %s81
      %p83 = scmp.eq.s32.totalorder %s31, 0
      %p84 = por %p82, %p83
      %s85 = ssub.s32 %s25, %s32
      %p86 = scmp.eq.s32.totalorder %s85, 0
      %s88 = sadd.s32 %s87, 1
      %s89 = scalar_select %p86, %s87, %s88
      %p92 = pneg %p86
      %p93 = scmp.eq.s32.totalorder %s25, 1
      %p94 = por %p92, %p93
      %p95 = scmp.ne.s32.totalorder %s87, %s90
      %p96 = scmp.eq.s32.totalorder %s25, 0
      %p97 = por %p95, %p96
      %p98 = scmp.ne.s32.totalorder %s87, %s90
      %p99 = scmp.eq.s32.totalorder %s30, 1
      %p100 = por %p98, %p99
      %p101 = scmp.ne.s32.totalorder %s90, %s91
      %p102 = scmp.eq.s32.totalorder %s30, 0
      %p103 = por %p101, %p102
      %p104 = scmp.ne.s32.totalorder %s90, %s91
      %p105 = scmp.eq.s32.totalorder %s31, 1
      %p106 = por %p104, %p105
      %p108 = scmp.ne.s32.totalorder %s91, %s107
      %p109 = scmp.eq.s32.totalorder %s31, 0
      %p110 = por %p108, %p109
      %s112 = sadd.s32 %s111, 1
      %p115 = scmp.eq.s32.totalorder %s25, 1
      %p116 = scmp.ne.s32.totalorder %s111, %s113
      %p117 = scmp.eq.s32.totalorder %s25, 0
      %p118 = por %p116, %p117
      %p119 = scmp.ne.s32.totalorder %s111, %s113
      %p120 = scmp.eq.s32.totalorder %s30, 1
      %p121 = por %p119, %p120
      %p122 = scmp.ne.s32.totalorder %s113, %s114
      %p123 = scmp.eq.s32.totalorder %s30, 0
      %p124 = por %p122, %p123
      %p125 = scmp.ne.s32.totalorder %s113, %s114
      %p126 = scmp.eq.s32.totalorder %s31, 1
      %p127 = por %p125, %p126
      %p129 = scmp.ne.s32.totalorder %s114, %s128
      %p130 = scmp.eq.s32.totalorder %s31, 0
      %p131 = por %p129, %p130
      %s133 = sadd.s32 %s132, 1
      %p136 = scmp.eq.s32.totalorder %s25, 1
      %p137 = scmp.ne.s32.totalorder %s132, %s134
      %p138 = scmp.eq.s32.totalorder %s25, 0
      %p139 = por %p137, %p138
      %p140 = scmp.ne.s32.totalorder %s132, %s134
      %p141 = scmp.eq.s32.totalorder %s30, 1
      %p142 = por %p140, %p141
      %p143 = scmp.ne.s32.totalorder %s134, %s135
      %p144 = scmp.eq.s32.totalorder %s30, 0
      %p145 = por %p143, %p144
      %p146 = scmp.ne.s32.totalorder %s134, %s135
      %p147 = scmp.eq.s32.totalorder %s31, 1
      %p148 = por %p146, %p147
      %p150 = scmp.ne.s32.totalorder %s135, %s149
      %p151 = scmp.eq.s32.totalorder %s31, 0
      %p152 = por %p150, %p151
      %s154 = sadd.s32 %s153, 1
      %p157 = scmp.eq.s32.totalorder %s25, 1
      %p158 = scmp.ne.s32.totalorder %s153, %s155
      %p159 = scmp.eq.s32.totalorder %s25, 0
      %p160 = por %p158, %p159
      %p161 = scmp.ne.s32.totalorder %s153, %s155
      %p162 = scmp.eq.s32.totalorder %s30, 1
      %p163 = por %p161, %p162
      %p164 = scmp.ne.s32.totalorder %s155, %s156
      %p165 = scmp.eq.s32.totalorder %s30, 0
      %p166 = por %p164, %p165
      %p167 = scmp.ne.s32.totalorder %s155, %s156
      %p168 = scmp.eq.s32.totalorder %s31, 1
      %p169 = por %p167, %p168
      %p171 = scmp.ne.s32.totalorder %s156, %s170
      %p172 = scmp.eq.s32.totalorder %s31, 0
      %p173 = por %p171, %p172
      %s175 = sadd.s32 %s174, 1
      %p178 = scmp.eq.s32.totalorder %s25, 1
      %p179 = scmp.ne.s32.totalorder %s174, %s176
      %p180 = scmp.eq.s32.totalorder %s25, 0
      %p181 = por %p179, %p180
      %p182 = scmp.ne.s32.totalorder %s174, %s176
      %p183 = scmp.eq.s32.totalorder %s30, 1
      %p184 = por %p182, %p183
      %p185 = scmp.ne.s32.totalorder %s176, %s177
      %p186 = scmp.eq.s32.totalorder %s30, 0
      %p187 = por %p185, %p186
      %p188 = scmp.ne.s32.totalorder %s176, %s177
      %p189 = scmp.eq.s32.totalorder %s31, 1
      %p190 = por %p188, %p189
      %p192 = scmp.ne.s32.totalorder %s177, %s191
      %p193 = scmp.eq.s32.totalorder %s31, 0
      %p194 = por %p192, %p193
      %s196 = sadd.s32 %s195, 1
      %p199 = scmp.eq.s32.totalorder %s25, 1
      %p200 = scmp.ne.s32.totalorder %s195, %s197
      %p201 = scmp.eq.s32.totalorder %s25, 0
      %p202 = por %p200, %p201
      %p203 = scmp.ne.s32.totalorder %s195, %s197
      %p204 = scmp.eq.s32.totalorder %s30, 1
      %p205 = por %p203, %p204
      %p206 = scmp.ne.s32.totalorder %s197, %s198
      %p207 = scmp.eq.s32.totalorder %s30, 0
      %p208 = por %p206, %p207
      %p209 = scmp.ne.s32.totalorder %s197, %s198
      %p210 = scmp.eq.s32.totalorder %s31, 1
      %p211 = por %p209, %p210
      %p213 = scmp.ne.s32.totalorder %s198, %s212
      %p214 = scmp.eq.s32.totalorder %s31, 0
      %p215 = por %p213, %p214
      %s217 = sadd.s32 %s216, 1
      %p220 = scmp.eq.s32.totalorder %s25, 1
      %p221 = scmp.ne.s32.totalorder %s216, %s218
      %p222 = scmp.eq.s32.totalorder %s25, 0
      %p223 = por %p221, %p222
      %p224 = scmp.ne.s32.totalorder %s216, %s218
      %p225 = scmp.eq.s32.totalorder %s30, 1
      %p226 = por %p224, %p225
      %p227 = scmp.ne.s32.totalorder %s218, %s219
      %p228 = scmp.eq.s32.totalorder %s30, 0
      %p229 = por %p227, %p228
      %p230 = scmp.ne.s32.totalorder %s218, %s219
      %p231 = scmp.eq.s32.totalorder %s31, 1
      %p232 = por %p230, %p231
      %p234 = scmp.ne.s32.totalorder %s219, %s233
      %p235 = scmp.eq.s32.totalorder %s31, 0
      %p236 = por %p234, %p235
      %s237 = ssub.s32 %s25, %s32
      %p238 = scmp.eq.s32.totalorder %s237, 0
      %s240 = sadd.s32 %s239, 1
      %s241 = scalar_select %p238, %s239, %s240
      %p244 = pneg %p238
      %p245 = scmp.eq.s32.totalorder %s25, 1
      %p246 = por %p244, %p245
      %p247 = scmp.ne.s32.totalorder %s239, %s242
      %p248 = scmp.eq.s32.totalorder %s25, 0
      %p249 = por %p247, %p248
      %p250 = scmp.ne.s32.totalorder %s239, %s242
      %p251 = scmp.eq.s32.totalorder %s30, 1
      %p252 = por %p250, %p251
      %p253 = scmp.ne.s32.totalorder %s242, %s243
      %p254 = scmp.eq.s32.totalorder %s30, 0
      %p255 = por %p253, %p254
      %p256 = scmp.ne.s32.totalorder %s242, %s243
      %p257 = scmp.eq.s32.totalorder %s31, 1
      %p258 = por %p256, %p257
      %p260 = scmp.ne.s32.totalorder %s243, %s259
      %p261 = scmp.eq.s32.totalorder %s31, 0
      %p262 = por %p260, %p261
      %s263 = ssub.s32 %s25, %s32
      %p264 = scmp.eq.s32.totalorder %s263, 0
      %s266 = sadd.s32 %s265, 1
      %s267 = scalar_select %p264, %s265, %s266
      %p270 = pneg %p264
      %p271 = scmp.eq.s32.totalorder %s25, 1
      %p272 = por %p270, %p271
      %p273 = scmp.ne.s32.totalorder %s265, %s268
      %p274 = scmp.eq.s32.totalorder %s25, 0
      %p275 = por %p273, %p274
      %p276 = scmp.ne.s32.totalorder %s265, %s268
      %p277 = scmp.eq.s32.totalorder %s30, 1
      %p278 = por %p276, %p277
      %p279 = scmp.ne.s32.totalorder %s268, %s269
      %p280 = scmp.eq.s32.totalorder %s30, 0
      %p281 = por %p279, %p280
      %p282 = scmp.ne.s32.totalorder %s268, %s269
      %p283 = scmp.eq.s32.totalorder %s31, 1
      %p284 = por %p282, %p283
      %p286 = scmp.ne.s32.totalorder %s269, %s285
      %p287 = scmp.eq.s32.totalorder %s31, 0
      %p288 = por %p286, %p287
      %p289 = scmp.le.s32.totalorder 1, %s25
      %p290 = scmp.lt.s32.totalorder %s25, 3
      %p291 = pnand %p289, %p290
      %p292 = pneg %p291
      // Predicated region
      $region9: #{tpu_custom_call.1} parent=5 // pred_check
        _
      $region10: #{tpu_custom_call.1} parent=5 // pred_check_branch
        %294 = sbr.rel (%p291) target = $region12
      $region11: #{tpu_custom_call.1} parent=5 // pred_region
        %s295 = ssub.s32 %s25, 1
        // Predicated region
        $region13: #{tpu_custom_call.1} parent=11 // pred_check
          %p296 = pneg %p124
        $region14: #{tpu_custom_call.1} parent=11 // pred_check_branch
          %298 = sbr.rel (%p296) target = $region16
        $region15: #{tpu_custom_call.1} parent=11 // pred_region
          _
        $region16: #{tpu_custom_call.1} parent=11 // pred_fallthru
          _
        // Predicated region
        $region17: #{tpu_custom_call.1} parent=11 // pred_check
          %p299 = pneg %p145
        $region18: #{tpu_custom_call.1} parent=11 // pred_check_branch
          %301 = sbr.rel (%p299) target = $region20
        $region19: #{tpu_custom_call.1} parent=11 // pred_region
          _
        $region20: #{tpu_custom_call.1} parent=11 // pred_fallthru
          _
        // Predicated region
        $region21: #{tpu_custom_call.1} parent=11 // pred_check
          %p302 = pneg %p166
        $region22: #{tpu_custom_call.1} parent=11 // pred_check_branch
          %304 = sbr.rel (%p302) target = $region24
        $region23: #{tpu_custom_call.1} parent=11 // pred_region
          _
        $region24: #{tpu_custom_call.1} parent=11 // pred_fallthru
          _
        // Predicated region
        $region25: #{tpu_custom_call.1} parent=11 // pred_check
          %p305 = pneg %p187
        $region26: #{tpu_custom_call.1} parent=11 // pred_check_branch
          %307 = sbr.rel (%p305) target = $region28
        $region27: #{tpu_custom_call.1} parent=11 // pred_region
          _
        $region28: #{tpu_custom_call.1} parent=11 // pred_fallthru
          _
        // Predicated region
        $region29: #{tpu_custom_call.1} parent=11 // pred_check
          %p308 = pneg %p208
        $region30: #{tpu_custom_call.1} parent=11 // pred_check_branch
          %310 = sbr.rel (%p308) target = $region32
        $region31: #{tpu_custom_call.1} parent=11 // pred_region
          _
        $region32: #{tpu_custom_call.1} parent=11 // pred_fallthru
          _
        // Predicated region
        $region33: #{tpu_custom_call.1} parent=11 // pred_check
          %p311 = pneg %p229
        $region34: #{tpu_custom_call.1} parent=11 // pred_check_branch
          %313 = sbr.rel (%p311) target = $region36
        $region35: #{tpu_custom_call.1} parent=11 // pred_region
          _
        $region36: #{tpu_custom_call.1} parent=11 // pred_fallthru
          _
      $region12: #{tpu_custom_call.1} parent=5 // pred_fallthru
        _
      %p314 = scmp.lt.s32.totalorder %s25, 2
      // Predicated region
      $region37: #{tpu_custom_call.1} parent=5 // pred_check
        %p315 = pneg %p314
      $region38: #{tpu_custom_call.1} parent=5 // pred_check_branch
        %317 = sbr.rel (%p315) target = $region40
      $region39: #{tpu_custom_call.1} parent=5 // pred_region
        // Predicated region
        $region41: #{tpu_custom_call.1} parent=39 // pred_check
          %p318 = pneg %p45
        $region42: #{tpu_custom_call.1} parent=39 // pred_check_branch
          %320 = sbr.rel (%p318) target = $region44
        $region43: #{tpu_custom_call.1} parent=39 // pred_region
          %p321 = scmp.lt.s32.totalorder %s25, 1
          %s322 = scalar_select %p321, %s25, 1
          %s323 = smul.addr %s322, 8
          %s324 = scalar_lea.vmem %s0, %s323
        $region44: #{tpu_custom_call.1} parent=39 // pred_fallthru
          _
        // Predicated region
        $region45: #{tpu_custom_call.1} parent=39 // pred_check
          %p325 = pneg %p71
        $region46: #{tpu_custom_call.1} parent=39 // pred_check_branch
          %327 = sbr.rel (%p325) target = $region48
        $region47: #{tpu_custom_call.1} parent=39 // pred_region
          %p328 = scmp.lt.s32.totalorder %s25, 1
          %s329 = scalar_select %p328, %s25, 1
          %s330 = smul.addr %s329, 8
          %s331 = scalar_lea.vmem %s1, %s330
        $region48: #{tpu_custom_call.1} parent=39 // pred_fallthru
          _
        // Predicated region
        $region49: #{tpu_custom_call.1} parent=39 // pred_check
          %p332 = pneg %p97
        $region50: #{tpu_custom_call.1} parent=39 // pred_check_branch
          %334 = sbr.rel (%p332) target = $region52
        $region51: #{tpu_custom_call.1} parent=39 // pred_region
          %p335 = scmp.lt.s32.totalorder %s25, 1
          %s336 = scalar_select %p335, %s25, 1
          %s337 = scalar_lea.vmem %s2, %s336
        $region52: #{tpu_custom_call.1} parent=39 // pred_fallthru
          _
      $region40: #{tpu_custom_call.1} parent=5 // pred_fallthru
        _
      %p338 = scmp.le.s32.totalorder 1, %s25
      %p339 = scmp.lt.s32.totalorder %s25, 3
      %p340 = pnand %p338, %p339
      %p341 = pneg %p340
      // Predicated region
      $region53: #{tpu_custom_call.1} parent=5 // pred_check
        _
      $region54: #{tpu_custom_call.1} parent=5 // pred_check_branch
        %343 = sbr.rel (%p340) target = $region56
      $region55: #{tpu_custom_call.1} parent=5 // pred_region
        %s344 = ssub.s32 %s25, 1
        %p345 = scmp.lt.s32.totalorder %s30, 1
        %s346 = scalar_select %p345, %s30, 1
        %s347 = smul.addr %s346, 8
        %s348 = scalar_lea.vmem %s0, %s347
        %p349 = pneg %p51
        %p350 = pneg %p48
        %p351 = scmp.lt.s32.totalorder %s30, 1
        %s352 = scalar_select %p351, %s30, 1
        %s353 = smul.addr %s352, 8
        %s354 = scalar_lea.vmem %s1, %s353
        %p355 = pneg %p77
        %p356 = pneg %p74
        %p357 = scmp.lt.s32.totalorder %s30, 1
        %s358 = scalar_select %p357, %s30, 1
        %s359 = scalar_lea.vmem %s2, %s358
        %p360 = pneg %p103
        %p361 = pneg %p100
        %p362 = pneg %p124
        %p363 = pneg %p121
        %p364 = pneg %p145
        %p365 = pneg %p142
        %p366 = pneg %p166
        %p367 = pneg %p163
        %p368 = pneg %p187
        %p369 = pneg %p184
        %p370 = pneg %p208
        %p371 = pneg %p205
        %p372 = pneg %p229
        %p373 = pneg %p226
        %p374 = pneg %p255
        %p375 = pneg %p252
        %s376 = sand.u32 %s242, 1
        %s377 = scalar_lea.sflag [#allocation4], %s376
        %s378 = sand.u32 %s242, 1
        %s379 = smul.addr %s378, 8
        %s380 = scalar_lea.vmem [#allocation3], %s379
        %p381 = pneg %p281
        %p382 = pneg %p278
        %s383 = sand.u32 %s268, 1
        %s384 = scalar_lea.sflag [#allocation6], %s383
        %s385 = sand.u32 %s268, 1
        %s386 = smul.addr %s385, 16
        %s387 = scalar_lea.vmem [#allocation5], %s386
        %p388 = scmp.lt.s32.totalorder %s30, 1
        %s389 = scalar_select %p388, %s30, 1
        %s390 = smul.addr %s389, 8
        %s391 = scalar_lea.vmem %s0, %s390
        %p392 = scmp.lt.s32.totalorder %s30, 1
        %s393 = scalar_select %p392, %s30, 1
        %s394 = smul.addr %s393, 8
        %s395 = scalar_lea.vmem %s1, %s394
        %p396 = scmp.lt.s32.totalorder %s30, 1
        %s397 = scalar_select %p396, %s30, 1
        %s398 = scalar_lea.vmem %s2, %s397
        %v399 = vld [vmem:[%s3] sm:$0xff]
        %v400 = vld [vmem:[%s3 + $0x8] sm:$0xff]
        %v401 = vld [vmem:[%s3 + $0x10] sm:$0xff]
        %v402 = vld [vmem:[%s3 + $0x18] sm:$0xff]
        %v403 = vld [vmem:[%s5] sm:$0xff]
        %v404 = vld [vmem:[%s5 + $0x8] sm:$0xff]
        %v405 = vld [vmem:[%s5 + $0x10] sm:$0xff]
        %v406 = vld [vmem:[%s5 + $0x18] sm:$0xff]
        %v407 = vld [vmem:[%s4] sm:$0x1]
        %v408 = vld [vmem:[%s6] sm:$0x1]
        %v409 = vld [vmem:[%s7] sm:$0xff]
        %v410 = vld [vmem:[%s7 + $0x8] sm:$0xff]
        %v411 = vld [vmem:[%s7 + $0x10] sm:$0xff]
        %v412 = vld [vmem:[%s7 + $0x18] sm:$0xff]
        %v413 = vld [vmem:[%s7 + $0x20] sm:$0xff]
        %v414 = vld [vmem:[%s7 + $0x28] sm:$0xff]
        %v415 = vld [vmem:[%s7 + $0x30] sm:$0xff]
        %v416 = vld [vmem:[%s7 + $0x38] sm:$0xff]
        %v417 = vld [vmem:[%s7 + $0x40] sm:$0xff]
        %v418 = vld [vmem:[%s7 + $0x48] sm:$0xff]
        %v419 = vld [vmem:[%s7 + $0x50] sm:$0xff]
        %v420 = vld [vmem:[%s7 + $0x58] sm:$0xff]
        %v421 = vld [vmem:[%s7 + $0x60] sm:$0xff]
        %v422 = vld [vmem:[%s7 + $0x68] sm:$0xff]
        %v423 = vld [vmem:[%s7 + $0x70] sm:$0xff]
        %v424 = vld [vmem:[%s7 + $0x78] sm:$0xff]
        %v425 = vld [vmem:[%s7 + $0x80] sm:$0xff]
        %v426 = vld [vmem:[%s7 + $0x88] sm:$0xff]
        %v427 = vld [vmem:[%s7 + $0x90] sm:$0xff]
        %v428 = vld [vmem:[%s7 + $0x98] sm:$0xff]
        %v429 = vld [vmem:[%s7 + $0xa0] sm:$0xff]
        %v430 = vld [vmem:[%s7 + $0xa8] sm:$0xff]
        %v431 = vld [vmem:[%s7 + $0xb0] sm:$0xff]
        %v432 = vld [vmem:[%s7 + $0xb8] sm:$0xff]
        %v433 = vld [vmem:[%s7 + $0xc0] sm:$0xff]
        %v434 = vld [vmem:[%s7 + $0xc8] sm:$0xff]
        %v435 = vld [vmem:[%s7 + $0xd0] sm:$0xff]
        %v436 = vld [vmem:[%s7 + $0xd8] sm:$0xff]
        %v437 = vld [vmem:[%s7 + $0xe0] sm:$0xff]
        %v438 = vld [vmem:[%s7 + $0xe8] sm:$0xff]
        %v439 = vld [vmem:[%s7 + $0xf0] sm:$0xff]
        %v440 = vld [vmem:[%s7 + $0xf8] sm:$0xff]
        %v441 = vld [vmem:[%s391] sm:$0xff]
        %v442 = vld [vmem:[%s395] sm:$0xff]
        %v444 = vlaneseq
        %v445 = vshrl.u32 %v444, 7
        %v446 = vsub.s32 0, %v445
        %v447 = vrot.slane %v407, %v446
        %vm449 = vcmask 261120
        %v451 = vsel %vm449, %v442, 0
        %v454 = vsel %vm449, %v399, 0
        %v457 = vsel %vm449, %v400, 0
        %v460 = vsel %vm449, %v401, 0
        %v463 = vsel %vm449, %v402, 0
        %465 = vmatprep.subr.mxu0 0.0
        %466 = vmatpush1.xpose.msra.mxu0 %v454
        %467 = vmatprep.subr.mxu0 0.0
        %468 = vmatpush1.xpose.msra.mxu0 %v457
        %469 = vmatprep.subr.mxu0 0.0
        %470 = vmatpush1.xpose.msra.mxu0 %v460
        %471 = vmatprep.subr.mxu0 0.0
        %472 = vmatpush1.xpose.msra.mxu0 %v463
        %473 = vmatprep.subr.mxu0 0.0
        %474 = vmatpush1.xpose.msra.mxu0 0.0
        %475 = vmatprep.subr.mxu0 0.0
        %476 = vmatpush1.xpose.msra.mxu0 0.0
        %477 = vmatprep.subr.mxu0 0.0
        %478 = vmatpush1.xpose.msra.mxu0 0.0
        %479 = vmatprep.subr.mxu0 0.0
        %480 = vmatpush1.xpose.msra.mxu0 0.0
        %481 = vmatprep.subr.mxu0 0.0
        %482 = vmatpush1.xpose.msra.mxu0 0.0
        %483 = vmatprep.subr.mxu0 0.0
        %484 = vmatpush1.xpose.msra.mxu0 0.0
        %485 = vmatprep.subr.mxu0 0.0
        %486 = vmatpush1.xpose.msra.mxu0 0.0
        %487 = vmatprep.subr.mxu0 0.0
        %488 = vmatpush1.xpose.msra.mxu0 0.0
        %489 = vmatprep.subr.mxu0 0.0
        %490 = vmatpush1.xpose.msra.mxu0 0.0
        %491 = vmatprep.subr.mxu0 0.0
        %492 = vmatpush1.xpose.msra.mxu0 0.0
        %493 = vmatprep.subr.mxu0 0.0
        %494 = vmatpush1.xpose.msra.mxu0 0.0
        %495 = vmatprep.subr.mxu0 0.0
        %496 = vmatpush1.xpose.msra.mxu0 0.0
        %497 = vmatprep.subr.mxu0 0.0
        %498 = vmatpush1.xpose.msra.mxu0 0.0
        %499 = vmatprep.subr.mxu0 0.0
        %500 = vmatpush1.xpose.msra.mxu0 0.0
        %501 = vmatprep.subr.mxu0 0.0
        %502 = vmatpush1.xpose.msra.mxu0 0.0
        %503 = vmatprep.subr.mxu0 0.0
        %504 = vmatpush1.xpose.msra.mxu0 0.0
        %505 = vmatprep.subr.mxu0 0.0
        %506 = vmatpush1.xpose.msra.mxu0 0.0
        %507 = vmatprep.subr.mxu0 0.0
        %508 = vmatpush1.xpose.msra.mxu0 0.0
        %509 = vmatprep.subr.mxu0 0.0
        %510 = vmatpush1.xpose.msra.mxu0 0.0
        %511 = vmatprep.subr.mxu0 0.0
        %512 = vmatpush1.xpose.msra.mxu0 0.0
        %513 = vmatprep.subr.mxu0 0.0
        %514 = vmatpush1.xpose.msra.mxu0 0.0
        %515 = vmatprep.subr.mxu0 0.0
        %516 = vmatpush1.xpose.msra.mxu0 0.0
        %517 = vmatprep.subr.mxu0 0.0
        %518 = vmatpush1.xpose.msra.mxu0 0.0
        %519 = vmatprep.subr.mxu0 0.0
        %520 = vmatpush1.xpose.msra.mxu0 0.0
        %521 = vmatprep.subr.mxu0 0.0
        %522 = vmatpush1.xpose.msra.mxu0 0.0
        %523 = vmatprep.subr.mxu0 0.0
        %524 = vmatpush1.xpose.msra.mxu0 0.0
        %525 = vmatprep.subr.mxu0 0.0
        %526 = vmatpush1.xpose.msra.mxu0 0.0
        %527 = vmatprep.subr.mxu0 0.0
        %528 = vmatpush1.xpose.msra.mxu0 0.0
        %529 = vmatprep.mubr.f32.mxu0 0.0
        %530 = vmatmul.mubr.f32.gmra.mrb[0].mxu0 %v451
        %v531 = vpop.f32.mrb[0].mxu0
        %v532 = vadd.f32 %v447, %v531
        %v533 = vpop.f32.mrb[0].mxu0
        %534 = vdwg.mxu0
        %v536 = vlaneseq
        %v537 = vshrl.u32 %v536, 7
        %v538 = vsub.s32 0, %v537
        %v539 = vrot.slane %v408, %v538
        %v542 = vsel %vm449, %v441, 0
        %v545 = vsel %vm449, %v403, 0
        %v548 = vsel %vm449, %v404, 0
        %v551 = vsel %vm449, %v405, 0
        %v554 = vsel %vm449, %v406, 0
        %556 = vmatprep.subr.mxu0 0.0
        %557 = vmatpush1.xpose.msra.mxu0 %v545
        %558 = vmatprep.subr.mxu0 0.0
        %559 = vmatpush1.xpose.msra.mxu0 %v548
        %560 = vmatprep.subr.mxu0 0.0
        %561 = vmatpush1.xpose.msra.mxu0 %v551
        %562 = vmatprep.subr.mxu0 0.0
        %563 = vmatpush1.xpose.msra.mxu0 %v554
        %564 = vmatprep.subr.mxu0 0.0
        %565 = vmatpush1.xpose.msra.mxu0 0.0
        %566 = vmatprep.subr.mxu0 0.0
        %567 = vmatpush1.xpose.msra.mxu0 0.0
        %568 = vmatprep.subr.mxu0 0.0
        %569 = vmatpush1.xpose.msra.mxu0 0.0
        %570 = vmatprep.subr.mxu0 0.0
        %571 = vmatpush1.xpose.msra.mxu0 0.0
        %572 = vmatprep.subr.mxu0 0.0
        %573 = vmatpush1.xpose.msra.mxu0 0.0
        %574 = vmatprep.subr.mxu0 0.0
        %575 = vmatpush1.xpose.msra.mxu0 0.0
        %576 = vmatprep.subr.mxu0 0.0
        %577 = vmatpush1.xpose.msra.mxu0 0.0
        %578 = vmatprep.subr.mxu0 0.0
        %579 = vmatpush1.xpose.msra.mxu0 0.0
        %580 = vmatprep.subr.mxu0 0.0
        %581 = vmatpush1.xpose.msra.mxu0 0.0
        %582 = vmatprep.subr.mxu0 0.0
        %583 = vmatpush1.xpose.msra.mxu0 0.0
        %584 = vmatprep.subr.mxu0 0.0
        %585 = vmatpush1.xpose.msra.mxu0 0.0
        %586 = vmatprep.subr.mxu0 0.0
        %587 = vmatpush1.xpose.msra.mxu0 0.0
        %588 = vmatprep.subr.mxu0 0.0
        %589 = vmatpush1.xpose.msra.mxu0 0.0
        %590 = vmatprep.subr.mxu0 0.0
        %591 = vmatpush1.xpose.msra.mxu0 0.0
        %592 = vmatprep.subr.mxu0 0.0
        %593 = vmatpush1.xpose.msra.mxu0 0.0
        %594 = vmatprep.subr.mxu0 0.0
        %595 = vmatpush1.xpose.msra.mxu0 0.0
        %596 = vmatprep.subr.mxu0 0.0
        %597 = vmatpush1.xpose.msra.mxu0 0.0
        %598 = vmatprep.subr.mxu0 0.0
        %599 = vmatpush1.xpose.msra.mxu0 0.0
        %600 = vmatprep.subr.mxu0 0.0
        %601 = vmatpush1.xpose.msra.mxu0 0.0
        %602 = vmatprep.subr.mxu0 0.0
        %603 = vmatpush1.xpose.msra.mxu0 0.0
        %604 = vmatprep.subr.mxu0 0.0
        %605 = vmatpush1.xpose.msra.mxu0 0.0
        %606 = vmatprep.subr.mxu0 0.0
        %607 = vmatpush1.xpose.msra.mxu0 0.0
        %608 = vmatprep.subr.mxu0 0.0
        %609 = vmatpush1.xpose.msra.mxu0 0.0
        %610 = vmatprep.subr.mxu0 0.0
        %611 = vmatpush1.xpose.msra.mxu0 0.0
        %612 = vmatprep.subr.mxu0 0.0
        %613 = vmatpush1.xpose.msra.mxu0 0.0
        %614 = vmatprep.subr.mxu0 0.0
        %615 = vmatpush1.xpose.msra.mxu0 0.0
        %616 = vmatprep.subr.mxu0 0.0
        %617 = vmatpush1.xpose.msra.mxu0 0.0
        %618 = vmatprep.subr.mxu0 0.0
        %619 = vmatpush1.xpose.msra.mxu0 0.0
        %620 = vmatprep.mubr.f32.mxu0 0.0
        %621 = vmatmul.mubr.f32.gmra.mrb[0].mxu0 %v542
        %v622 = vpop.f32.mrb[0].mxu0
        %v623 = vadd.f32 %v539, %v622
        %v624 = vpop.f32.mrb[0].mxu0
        %625 = vdwg.mxu0
        %v626 = vlaneseq
        %v627 = vshrl.u32 %v626, 7
        %v628 = vsub.s32 0, %v627
        %v629 = vrot.slane %v623, %v628
        %v630 = vadd.f32 %v532, %v629
        %v631 = vtanh.pop %v630
        %v632 = vlaneseq
        %v633 = vshrl.u32 %v632, 7
        %v634 = vsub.s32 1, %v633
        %v635 = vrot.slane %v623, %v634
        %v636 = vadd.f32 %v532, %v635
        %v637 = vtanh.pop %v636
        %v638 = vlaneseq
        %v639 = vshrl.u32 %v638, 7
        %v640 = vsub.s32 2, %v639
        %v641 = vrot.slane %v623, %v640
        %v642 = vadd.f32 %v532, %v641
        %v643 = vtanh.pop %v642
        %v644 = vlaneseq
        %v645 = vshrl.u32 %v644, 7
        %v646 = vsub.s32 3, %v645
        %v647 = vrot.slane %v623, %v646
        %v648 = vadd.f32 %v532, %v647
        %v649 = vtanh.pop %v648
        %v650 = vlaneseq
        %v651 = vshrl.u32 %v650, 7
        %v652 = vsub.s32 4, %v651
        %v653 = vrot.slane %v623, %v652
        %v654 = vadd.f32 %v532, %v653
        %v655 = vtanh.pop %v654
        %v656 = vlaneseq
        %v657 = vshrl.u32 %v656, 7
        %v658 = vsub.s32 5, %v657
        %v659 = vrot.slane %v623, %v658
        %v660 = vadd.f32 %v532, %v659
        %v661 = vtanh.pop %v660
        %v662 = vlaneseq
        %v663 = vshrl.u32 %v662, 7
        %v664 = vsub.s32 6, %v663
        %v665 = vrot.slane %v623, %v664
        %v666 = vadd.f32 %v532, %v665
        %v667 = vtanh.pop %v666
        %v668 = vlaneseq
        %v669 = vshrl.u32 %v668, 7
        %v670 = vsub.s32 7, %v669
        %v671 = vrot.slane %v623, %v670
        %v672 = vadd.f32 %v532, %v671
        %v673 = vtanh.pop %v672
        %675 = vrot.lane.b32.xlu0 %v637, 32
        %v676 = vpop.permute.xlu0 %675
        %679 = vrot.lane.b32.xlu0 %v643, 64
        %v680 = vpop.permute.xlu0 %679
        %683 = vrot.lane.b32.xlu0 %v649, 96
        %v684 = vpop.permute.xlu0 %683
        %687 = vrot.lane.b32.xlu0 %v661, 32
        %v688 = vpop.permute.xlu0 %687
        %691 = vrot.lane.b32.xlu0 %v667, 64
        %v692 = vpop.permute.xlu0 %691
        %695 = vrot.lane.b32.xlu0 %v673, 96
        %v696 = vpop.permute.xlu0 %695
        %v698 = vsel %vm449, %v631, %v676
        %vm699 = vcmask 523264
        %v700 = vsel %vm699, %v698, %v680
        %vm701 = vcmask 785408
        %v702 = vsel %vm701, %v700, %v684
        %v703 = vsel %vm449, %v655, %v688
        %v704 = vsel %vm699, %v703, %v692
        %v705 = vsel %vm701, %v704, %v696
        %706 = vst [vmem:[%s387] sm:$0xff] %v702
        %707 = vst [vmem:[%s387 + $0x8] sm:$0xff] %v705
        %v708 = vld [vmem:[#allocation2] sm:$0x1]
        %v710 = vlaneseq
        %v711 = vshrl.u32 %v710, 7
        %v712 = vsub.s32 0, %v711
        %v713 = vrot.slane %v708, %v712
        %714 = vset.pattern.permute.xlu0 0
        %715 = vperm.xlu0 %714, %v713
        %v716 = vpop.permute.xlu0 %715
        %718 = vmatprep.subr.mxu0 0.0
        %719 = vmatpush1.msra.mxu0 %v409
        %720 = vmatprep.subr.mxu0 0.0
        %721 = vmatpush1.msra.mxu0 %v410
        %722 = vmatprep.subr.mxu0 0.0
        %723 = vmatpush1.msra.mxu0 %v411
        %724 = vmatprep.subr.mxu0 0.0
        %725 = vmatpush1.msra.mxu0 %v412
        %726 = vmatprep.subr.mxu0 0.0
        %727 = vmatpush1.msra.mxu0 %v413
        %728 = vmatprep.subr.mxu0 0.0
        %729 = vmatpush1.msra.mxu0 %v414
        %730 = vmatprep.subr.mxu0 0.0
        %731 = vmatpush1.msra.mxu0 %v415
        %732 = vmatprep.subr.mxu0 0.0
        %733 = vmatpush1.msra.mxu0 %v416
        %734 = vmatprep.subr.mxu0 0.0
        %735 = vmatpush1.msra.mxu0 %v417
        %736 = vmatprep.subr.mxu0 0.0
        %737 = vmatpush1.msra.mxu0 %v418
        %738 = vmatprep.subr.mxu0 0.0
        %739 = vmatpush1.msra.mxu0 %v419
        %740 = vmatprep.subr.mxu0 0.0
        %741 = vmatpush1.msra.mxu0 %v420
        %742 = vmatprep.subr.mxu0 0.0
        %743 = vmatpush1.msra.mxu0 %v421
        %744 = vmatprep.subr.mxu0 0.0
        %745 = vmatpush1.msra.mxu0 %v422
        %746 = vmatprep.subr.mxu0 0.0
        %747 = vmatpush1.msra.mxu0 %v423
        %748 = vmatprep.subr.mxu0 0.0
        %749 = vmatpush1.msra.mxu0 %v424
        %750 = vmatprep.subr.mxu0 0.0
        %751 = vmatpush1.msra.mxu0 %v425
        %752 = vmatprep.subr.mxu0 0.0
        %753 = vmatpush1.msra.mxu0 %v426
        %754 = vmatprep.subr.mxu0 0.0
        %755 = vmatpush1.msra.mxu0 %v427
        %756 = vmatprep.subr.mxu0 0.0
        %757 = vmatpush1.msra.mxu0 %v428
        %758 = vmatprep.subr.mxu0 0.0
        %759 = vmatpush1.msra.mxu0 %v429
        %760 = vmatprep.subr.mxu0 0.0
        %761 = vmatpush1.msra.mxu0 %v430
        %762 = vmatprep.subr.mxu0 0.0
        %763 = vmatpush1.msra.mxu0 %v431
        %764 = vmatprep.subr.mxu0 0.0
        %765 = vmatpush1.msra.mxu0 %v432
        %766 = vmatprep.subr.mxu0 0.0
        %767 = vmatpush1.msra.mxu0 %v433
        %768 = vmatprep.subr.mxu0 0.0
        %769 = vmatpush1.msra.mxu0 %v434
        %770 = vmatprep.subr.mxu0 0.0
        %771 = vmatpush1.msra.mxu0 %v435
        %772 = vmatprep.subr.mxu0 0.0
        %773 = vmatpush1.msra.mxu0 %v436
        %774 = vmatprep.subr.mxu0 0.0
        %775 = vmatpush1.msra.mxu0 %v437
        %776 = vmatprep.subr.mxu0 0.0
        %777 = vmatpush1.msra.mxu0 %v438
        %778 = vmatprep.subr.mxu0 0.0
        %779 = vmatpush1.msra.mxu0 %v439
        %780 = vmatprep.subr.mxu0 0.0
        %781 = vmatpush1.msra.mxu0 %v440
        %782 = vmatprep.mubr.f32.mxu0 %v705
        %783 = vmatmul.mubr.f32.gmra.mrb[0].mxu0 %v702
        %v784 = vpop.f32.mrb[0].mxu0
        %v785 = vadd.f32 %v716, %v784
        %v786 = vpop.f32.mrb[0].mxu0
        %787 = vdwg.mxu0
        %v788 = vld [vmem:[%s398] sm:$0x1]
        %vm789 = vcmp.gt.s32.totalorder %v788, 0
        %v790 = vsel %vm789, 1, 0
        %v791 = vlaneseq
        %v792 = vshrl.u32 %v791, 7
        %v793 = vsub.s32 0, %v792
        %v794 = vrot.slane %v790, %v793
        %vm795 = vcmp.eq.s32.totalorder %v794, 1
        %v796 = vsel %vm795, -1e+09, %v785
        %vm797 = vcmask 64512
        %798 = vst.msk [vmem:[%s380] sm:$0xff] %vm797, %v796
        %s799 = sand.u32 %s242, 1
        %s800 = scalar_lea.sflag [#allocation4], %s799
        %s801 = sand.u32 %s242, 1
        %s802 = smul.addr %s801, 8
        %s803 = scalar_lea.vmem [#allocation3], %s802
        %s804 = sand.u32 %s268, 1
        %s805 = scalar_lea.sflag [#allocation6], %s804
        %s806 = sand.u32 %s268, 1
        %s807 = smul.addr %s806, 16
        %s808 = scalar_lea.vmem [#allocation5], %s807
        // Predicated region
        $region57: #{tpu_custom_call.1} parent=55 // pred_check
          %p809 = pneg %p252
        $region58: #{tpu_custom_call.1} parent=55 // pred_check_branch
          %811 = sbr.rel (%p809) target = $region60
        $region59: #{tpu_custom_call.1} parent=55 // pred_region
          %s813 = ssub.s32 128, 128
          %814 = vsyncadd %s800, %s813
          %s815 = smul.addr %s30, 128
          %s816 = scalar_lea.hbm %s9, %s815
          %s818 = sshll.u32 %s803, 4
          %s819 = int_to_ptr.vmem [resolvable:$true] %s818
          %821 = dma.vmem_to_hbm [thread:$0]  %s819, 128, %s816, %s800
        $region60: #{tpu_custom_call.1} parent=55 // pred_fallthru
          _
        // Predicated region
        $region61: #{tpu_custom_call.1} parent=55 // pred_check
          %p822 = pneg %p278
        $region62: #{tpu_custom_call.1} parent=55 // pred_check_branch
          %824 = sbr.rel (%p822) target = $region64
        $region63: #{tpu_custom_call.1} parent=55 // pred_region
          %s826 = ssub.s32 256, 256
          %827 = vsyncadd %s805, %s826
          %s828 = smul.addr %s30, 2
          %s829 = smul.addr %s828, 128
          %s830 = scalar_lea.hbm %s10, %s829
          %s832 = sshll.u32 %s808, 4
          %s833 = int_to_ptr.vmem [resolvable:$true] %s832
          %835 = dma.vmem_to_hbm [thread:$0]  %s833, 256, %s830, %s805
        $region64: #{tpu_custom_call.1} parent=55 // pred_fallthru
          _
      $region56: #{tpu_custom_call.1} parent=5 // pred_fallthru
        _
      %p836 = scmp.le.s32.totalorder 2, %s25
      // Predicated region
      $region65: #{tpu_custom_call.1} parent=5 // pred_check
        %p837 = pneg %p836
      $region66: #{tpu_custom_call.1} parent=5 // pred_check_branch
        %839 = sbr.rel (%p837) target = $region68
      $region67: #{tpu_custom_call.1} parent=5 // pred_region
        %s840 = ssub.s32 %s25, 2
        // Predicated region
        $region69: #{tpu_custom_call.1} parent=67 // pred_check
          %p841 = pneg %p258
        $region70: #{tpu_custom_call.1} parent=67 // pred_check_branch
          %843 = sbr.rel (%p841) target = $region72
        $region71: #{tpu_custom_call.1} parent=67 // pred_region
          %s844 = sand.u32 %s243, 1
          %s845 = scalar_lea.sflag [#allocation4], %s844
          %s846 = sand.u32 %s243, 1
          %s847 = smul.addr %s846, 8
          %s848 = scalar_lea.vmem [#allocation3], %s847
          %849 = dma.done %s845, 128
        $region72: #{tpu_custom_call.1} parent=67 // pred_fallthru
          _
        // Predicated region
        $region73: #{tpu_custom_call.1} parent=67 // pred_check
          %p850 = pneg %p284
        $region74: #{tpu_custom_call.1} parent=67 // pred_check_branch
          %852 = sbr.rel (%p850) target = $region76
        $region75: #{tpu_custom_call.1} parent=67 // pred_region
          %s853 = sand.u32 %s269, 1
          %s854 = scalar_lea.sflag [#allocation6], %s853
          %s855 = sand.u32 %s269, 1
          %s856 = smul.addr %s855, 16
          %s857 = scalar_lea.vmem [#allocation5], %s856
          %858 = dma.done %s854, 256
        $region76: #{tpu_custom_call.1} parent=67 // pred_fallthru
          _
      $region68: #{tpu_custom_call.1} parent=5 // pred_fallthru
        _
    $region6: #{tpu_custom_call.1} parent=1 // loop_footer
      %s29 = sadd.s32 1, %s25
    $region7: #{tpu_custom_call.1} parent=1 // loop_footer_branch
      %24 = sbr.rel target = $region3
    $region8: #{tpu_custom_call.1} parent=1 // loop_exit
      _
    %859 = vsyncpa [#allocation4], 1
    %s860 = scalar_lea.sflag [#allocation4], 1
    %861 = vsyncpa %s860, 1
    %862 = vsyncpa [#allocation6], 1
    %s863 = scalar_lea.sflag [#allocation6], 1
    %864 = vsyncpa %s863, 1

</llo_original>
